<compile_context>
chip_gen: v5e
topology: v5e:2x2
jax: 0.10.0
libtpu: 0.0.40
codegen_flags: <defaults>
</compile_context>

<pallas_src>
import jax
import jax.numpy as jnp
from jax.experimental import pallas as pl
from jax.experimental.pallas import tpu as pltpu

_LANE_CAP = 4096                          # max last-dim (lane) width considered
_TARGET_BLOCK_BYTES = 8 * 1024 * 1024     # ~8 MiB per buffer; 4 buffers (in/out x 2) = 32 MiB
_FALLBACK_PAD_MULTIPLE = 128              # pad path only when C*D*H*W % 128 != 0


def _pick_lanes(length):
    """Largest multiple-of-128 divisor of `length` that is <= _LANE_CAP, or None."""
    if length % 128 != 0:
        return None
    base = length // 128
    for k in range(min(_LANE_CAP // 128, base), 0, -1):
        if base % k == 0:
            return 128 * k
    return None


def _exposure_kernel(b_ref, c_ref, x_ref, o_ref):
    # b_ref, c_ref: SMEM (N,) scalar-prefetched per-sample brightness / contrast.
    # x_ref, o_ref: VMEM (1, Rt, lanes) tiles of the current sample.
    n = pl.program_id(0)
    o_ref[...] = ((x_ref[...] + b_ref[n]) * c_ref[n]).astype(o_ref.dtype)


def threed_exposure(x, key, brightness=0.0, contrast=0.0):
    """JAX/Pallas equivalent of ThreedExposure.forward.

    x: (N, 3, D, H, W) float. Returns an array of the same shape/dtype:
        (x + U(-brightness, brightness)[n]) * U(1-contrast, 1+contrast)[n]
    (The torch module mutates X in place; here we return a new array and alias
     input/output inside the pallas_call so a donated/dead input needs no 2nd HBM buffer.)
    """
    assert x.ndim == 5
    assert x.shape[1] == 3
    N, C, D, H, W = x.shape
    L = C * D * H * W
    itemsize = jnp.dtype(x.dtype).itemsize

    kb, kc = jax.random.split(key)
    b = jax.random.uniform(kb, (N,), jnp.float32,
                           minval=-brightness, maxval=brightness)
    c = jax.random.uniform(kc, (N,), jnp.float32,
                           minval=1.0 - contrast, maxval=1.0 + contrast)

    lanes = _pick_lanes(L)
    if lanes is not None:
        Lp, pad = L, 0                     # fast path: free reshape, no pad/slice copies
    else:
        # TODO(synk): last-resort pad path for element counts not divisible by 128
        # (costs two extra HBM passes: pad copy + un-pad slice).
        Lp = ((L + _FALLBACK_PAD_MULTIPLE - 1)
              // _FALLBACK_PAD_MULTIPLE) * _FALLBACK_PAD_MULTIPLE
        pad = Lp - L
        lanes = _pick_lanes(Lp)

    R = Lp // lanes

    # Row tile: aim for ~8 MiB blocks; multiple of 8 unless it spans the full extent.
    rt = max(1, _TARGET_BLOCK_BYTES // (lanes * itemsize))
    if rt >= R:
        Rt = R
    else:
        Rt = max(8, (rt // 8) * 8)

    # v7x has 2 TensorCores sharing "parallel" grid axes: for N == 1 make sure the row
    # axis yields >= 2 blocks so both cores stream (no effect on single-TC v5e/v6e).
    if N == 1 and Rt >= R and R >= 16:
        Rt = max(8, ((R // 2) // 8) * 8)

    x2d = x.reshape(N, L)
    if pad:
        x2d = jnp.pad(x2d, ((0, 0), (0, pad)))
    x3 = x2d.reshape(N, R, lanes)

    grid = (N, pl.cdiv(R, Rt))
    block = (1, Rt, lanes)

    out3 = pl.pallas_call(
        _exposure_kernel,
        out_shape=jax.ShapeDtypeStruct((N, R, lanes), x.dtype),
        grid_spec=pltpu.PrefetchScalarGridSpec(
            num_scalar_prefetch=2,                       # b, c land in SMEM
            grid=grid,
            in_specs=[pl.BlockSpec(block, lambda n, l, b_r, c_r: (n, l, 0))],
            out_specs=pl.BlockSpec(block, lambda n, l, b_r, c_r: (n, l, 0)),
        ),
        compiler_params=pltpu.CompilerParams(
            dimension_semantics=("parallel", "parallel"),
            vmem_limit_bytes=48 * 1024 * 1024,           # headroom for 8 MiB blocks, < v7x 64 MiB
        ),
        # Flat operand order is (b, c, x3): index 2 == the volume. Alias it with the output.
        input_output_aliases={2: 0},
        cost_estimate=pl.CostEstimate(
            flops=2 * N * Lp,
            transcendentals=0,
            bytes_accessed=2 * N * Lp * itemsize,
        ),
    )(b, c, x3)

    out2d = out3.reshape(N, Lp)
    if pad:
        out2d = out2d[:, :L]
    return out2d.reshape(N, C, D, H, W)


if __name__ == "__main__":
    key = jax.random.PRNGKey(0)
    kx, kparams = jax.random.split(key)

    # Small 5-D input consistent with the module: (N, C=3, D, H, W)
    N, C, D, H, W = 2, 3, 4, 8, 16
    x = jax.random.normal(kx, (N, C, D, H, W), jnp.float32)

    brightness, contrast = 0.2, 0.1
    fn = jax.jit(threed_exposure, static_argnames=("brightness", "contrast"))
    out = fn(x, kparams, brightness=brightness, contrast=contrast)
    out = jax.block_until_ready(out)

    # Reference check in plain JAX (same randoms).
    kb, kc = jax.random.split(kparams)
    b = jax.random.uniform(kb, (N,), jnp.float32, minval=-brightness, maxval=brightness)
    c = jax.random.uniform(kc, (N,), jnp.float32, minval=1.0 - contrast, maxval=1.0 + contrast)
    ref = (x + b[:, None, None, None, None]) * c[:, None, None, None, None]
    assert out.shape == x.shape and out.dtype == x.dtype
    assert jnp.allclose(out, ref, atol=1e-6), "mismatch vs reference"

    print("KERNEL_OK")
</pallas_src>

<mosaic_0001>
module attributes {stable_mosaic.version = 11 : i64} {
  func.func @_exposure_kernel(%arg0: i32, %arg1: i32, %arg2: memref<2xf32, #tpu.memory_space<smem>>, %arg3: memref<2xf32, #tpu.memory_space<smem>>, %arg4: memref<1x1x1536xf32, #tpu.memory_space<vmem>>, %arg5: memref<1x1x1536xf32, #tpu.memory_space<vmem>>) attributes {dimension_semantics = [#tpu.dimension_semantics<parallel>, #tpu.dimension_semantics<parallel>], iteration_bounds = array<i64: 2, 1>, scalar_prefetch = 2 : i64, scratch_operands = 0 : i64, tpu.core_type = #tpu.core_type<tc>, window_params = [{transform_indices = @transform_0, window_bounds = array<i64: 1, 1, 1536>}, {transform_indices = @transform_1, window_bounds = array<i64: 1, 1, 1536>}]} {
    %c0 = arith.constant 0 : index
    %c0_0 = arith.constant 0 : index
    %c0_1 = arith.constant 0 : index
    %0 = vector.load %arg4[%c0, %c0_0, %c0_1] : memref<1x1x1536xf32, #tpu.memory_space<vmem>>, vector<1x1x1536xf32>
    %1 = arith.index_cast %arg0 : i32 to index
    %2 = memref.load %arg2[%1] : memref<2xf32, #tpu.memory_space<smem>>
    %3 = vector.broadcast %2 : f32 to vector<1x1x1536xf32>
    %4 = arith.addf %0, %3 : vector<1x1x1536xf32>
    %5 = arith.index_cast %arg0 : i32 to index
    %6 = memref.load %arg3[%5] : memref<2xf32, #tpu.memory_space<smem>>
    %7 = vector.broadcast %6 : f32 to vector<1x1x1536xf32>
    %8 = arith.mulf %4, %7 : vector<1x1x1536xf32>
    %c0_2 = arith.constant 0 : index
    %c0_3 = arith.constant 0 : index
    %c0_4 = arith.constant 0 : index
    %9 = vector.load %arg5[%c0_2, %c0_3, %c0_4] : memref<1x1x1536xf32, #tpu.memory_space<vmem>>, vector<1x1x1536xf32>
    tpu.vector_store %arg5[%c0_2, %c0_3, %c0_4], %8 {strides = array<i32>} : memref<1x1x1536xf32, #tpu.memory_space<vmem>>, vector<1x1x1536xf32>,
    return
  }
  func.func @transform_0(%arg0: i32, %arg1: i32, %arg2: memref<2xf32, #tpu.memory_space<smem>>, %arg3: memref<2xf32, #tpu.memory_space<smem>>) -> (i32, i32, i32) {
    %c0_i32 = arith.constant 0 : i32
    %c0_i32_0 = arith.constant 0 : i32
    return %arg0, %arg1, %c0_i32 : i32, i32, i32
  }
  func.func @transform_1(%arg0: i32, %arg1: i32, %arg2: memref<2xf32, #tpu.memory_space<smem>>, %arg3: memref<2xf32, #tpu.memory_space<smem>>) -> (i32, i32, i32) {
    %c0_i32 = arith.constant 0 : i32
    %c0_i32_0 = arith.constant 0 : i32
    return %arg0, %arg1, %c0_i32 : i32, i32, i32
  }
}

</mosaic_0001>

<llo_original>
// kernel: threed_exposure.15
$region0: #{threed_exposure.15}
  #allocation0 [shape = 'u32[]', space=smem, size = 0x4, offset = 0x4, fixed_abs, tag = 'smem constant byte address 0x4 - core index']
  #allocation1 [shape = 'u32[72,128]{1,0:T(1,128)}', space=vmem, size = 0x9000, scoped, tag = 'internal scratch']
  #allocation2 [shape = 's32[1]{0}', space=sflag, size = 0x4, scoped, tag = 'scoped memory for threed_exposure.15']
  #allocation3 [shape = 'u8[512]{0}', space=smem, size = 0x200, scoped, tag = 'prefetched SMEM operand 0']
  #allocation4 [shape = 'u8[512]{0}', space=smem, size = 0x200, scoped, tag = 'prefetched SMEM operand 1']
  %s0 = inlined_call_operand.vmem [shape: f32[2], index: 0, kind: input, shape index: {}]
  %s1 = inlined_call_operand.vmem [shape: f32[2], index: 1, kind: input, shape index: {}]
  %s2 = inlined_call_operand.vmem [shape: f32[2,1,1536], index: 2, kind: input, shape index: {}, may-alias: {2,3}]
  %s3 = inlined_call_operand.vmem [shape: f32[2,1,1536], index: 3, kind: output, shape index: {}, may-alias: {2,3}]
  %s4 = sld [smem:[#allocation0]]
  $region37: #{threed_exposure.15} parent=0
    _
  %s6 = ssub.s32 1, %s4
  %s7 = scalar_select 0, %s6, %s4
  %s9 = sshll.u32 %s0, 4
  %s10 = int_to_ptr.vmem [resolvable:$true] %s9
  %12 = dma.vmem_to_smem %s10, 16, [#allocation3], [#allocation2]
  %s14 = sshll.u32 %s1, 4
  %s15 = int_to_ptr.vmem [resolvable:$true] %s14
  %17 = dma.vmem_to_smem %s15, 16, [#allocation4], [#allocation2]
  %19 = dma.done [#allocation2], 32
  %20 = sfence
  loop: start=0, step=1, limit=4
  $region2: #{threed_exposure.15} parent=0 // loop_pre_header
    _
  $region3: #{threed_exposure.15} parent=0 // loop_header
    %s22 = sphi 0, %s26
    %p23 = scmp.ge.s32.totalorder %s22, 4
    %s29 = sphi 0, %s41
    %s30 = sphi 0, %s37
    %s31 = sphi 0, %s29
    %s32 = sphi 0, %s30
    %s33 = sphi 0, %s31
    %s34 = sphi 0, %s32
    %s46 = sphi 0, %s48
    %s49 = sphi 0, %s46
    %s50 = sphi 0, %s49
    %s66 = sphi 0, %s50
    %s74 = sphi 0, %s76
    %s77 = sphi 0, %s74
    %s78 = sphi 0, %s77
    %s94 = sphi 0, %s78
  $region4: #{threed_exposure.15} parent=0 // loop_header_branch
    %25 = sbr.rel (%p23) target = $region8
  $region5: #{threed_exposure.15} parent=0 // loop_body
    %s27 = ssub.s32 %s22, 1
    %s28 = ssub.s32 %s22, 2
    %s35 = sadd.s32 1, %s30
    %p36 = scmp.ge.s32.totalorder %s35, 1
    %s37 = scalar_select %p36, 0, %s35
    %s38 = sadd.s32 1, %s29
    %s39 = scalar_select %p36, %s38, %s29
    %p40 = scmp.ge.s32.totalorder %s39, 2
    %s41 = scalar_select %p40, 0, %s39
    %s42 = ssub.s32 %s29, %s41
    %s43 = ssub.s32 %s30, %s37
    %s44 = sor.u32 %s42, %s43
    %p45 = scmp.eq.s32.totalorder %s44, 0
    %s47 = sadd.s32 %s46, 1
    %s48 = scalar_select %p45, %s46, %s47
    %p51 = pneg %p45
    %p52 = scmp.eq.s32.totalorder %s22, 1
    %p53 = por %p51, %p52
    %p54 = scmp.ne.s32.totalorder %s46, %s49
    %p55 = scmp.eq.s32.totalorder %s22, 0
    %p56 = por %p54, %p55
    %p57 = scmp.ne.s32.totalorder %s46, %s49
    %p58 = scmp.eq.s32.totalorder %s27, 1
    %p59 = por %p57, %p58
    %p60 = scmp.ne.s32.totalorder %s49, %s50
    %p61 = scmp.eq.s32.totalorder %s27, 0
    %p62 = por %p60, %p61
    %p63 = scmp.ne.s32.totalorder %s49, %s50
    %p64 = scmp.eq.s32.totalorder %s28, 1
    %p65 = por %p63, %p64
    %p67 = scmp.ne.s32.totalorder %s50, %s66
    %p68 = scmp.eq.s32.totalorder %s28, 0
    %p69 = por %p67, %p68
    %s70 = ssub.s32 %s29, %s41
    %s71 = ssub.s32 %s30, %s37
    %s72 = sor.u32 %s70, %s71
    %p73 = scmp.eq.s32.totalorder %s72, 0
    %s75 = sadd.s32 %s74, 1
    %s76 = scalar_select %p73, %s74, %s75
    %p79 = pneg %p73
    %p80 = scmp.eq.s32.totalorder %s22, 1
    %p81 = por %p79, %p80
    %p82 = scmp.ne.s32.totalorder %s74, %s77
    %p83 = scmp.eq.s32.totalorder %s22, 0
    %p84 = por %p82, %p83
    %p85 = scmp.ne.s32.totalorder %s74, %s77
    %p86 = scmp.eq.s32.totalorder %s27, 1
    %p87 = por %p85, %p86
    %p88 = scmp.ne.s32.totalorder %s77, %s78
    %p89 = scmp.eq.s32.totalorder %s27, 0
    %p90 = por %p88, %p89
    %p91 = scmp.ne.s32.totalorder %s77, %s78
    %p92 = scmp.eq.s32.totalorder %s28, 1
    %p93 = por %p91, %p92
    %p95 = scmp.ne.s32.totalorder %s78, %s94
    %p96 = scmp.eq.s32.totalorder %s28, 0
    %p97 = por %p95, %p96
    %p98 = scmp.le.s32.totalorder 1, %s22
    %p99 = scmp.lt.s32.totalorder %s22, 3
    %p100 = pnand %p98, %p99
    %p101 = pneg %p100
    // Predicated region
    $region9: #{threed_exposure.15} parent=5 // pred_check
      _
    $region10: #{threed_exposure.15} parent=5 // pred_check_branch
      %103 = sbr.rel (%p100) target = $region12
    $region11: #{threed_exposure.15} parent=5 // pred_region
      %s104 = ssub.s32 %s22, 1
    $region12: #{threed_exposure.15} parent=5 // pred_fallthru
      _
    %p105 = scmp.lt.s32.totalorder %s22, 2
    // Predicated region
    $region13: #{threed_exposure.15} parent=5 // pred_check
      %p106 = pneg %p105
    $region14: #{threed_exposure.15} parent=5 // pred_check_branch
      %108 = sbr.rel (%p106) target = $region16
    $region15: #{threed_exposure.15} parent=5 // pred_region
      // Predicated region
      $region17: #{threed_exposure.15} parent=15 // pred_check
        %p109 = pneg %p56
      $region18: #{threed_exposure.15} parent=15 // pred_check_branch
        %111 = sbr.rel (%p109) target = $region20
      $region19: #{threed_exposure.15} parent=15 // pred_region
        %p112 = scmp.lt.s32.totalorder %s29, 1
        %s113 = scalar_select %p112, %s29, 1
        %p114 = scmp.lt.s32.totalorder %s30, 0
        %s115 = scalar_select %p114, %s30, 0
        %s116 = smul.addr %s115, 12
        %s117 = smul.addr %s113, 12
        %s118 = sadd.s32 %s116, %s117
        %s119 = scalar_lea.vmem %s2, %s118
      $region20: #{threed_exposure.15} parent=15 // pred_fallthru
        _
    $region16: #{threed_exposure.15} parent=5 // pred_fallthru
      _
    %p120 = scmp.le.s32.totalorder 1, %s22
    %p121 = scmp.lt.s32.totalorder %s22, 3
    %p122 = pnand %p120, %p121
    %p123 = pneg %p122
    // Predicated region
    $region21: #{threed_exposure.15} parent=5 // pred_check
      _
    $region22: #{threed_exposure.15} parent=5 // pred_check_branch
      %125 = sbr.rel (%p122) target = $region24
    $region23: #{threed_exposure.15} parent=5 // pred_region
      %s126 = ssub.s32 %s22, 1
      %p127 = scmp.lt.s32.totalorder %s31, 1
      %s128 = scalar_select %p127, %s31, 1
      %p129 = scmp.lt.s32.totalorder %s32, 0
      %s130 = scalar_select %p129, %s32, 0
      %s131 = smul.addr %s130, 12
      %s132 = smul.addr %s128, 12
      %s133 = sadd.s32 %s131, %s132
      %s134 = scalar_lea.vmem %s2, %s133
      %p135 = pneg %p62
      %p136 = pneg %p59
      %p137 = pneg %p90
      %p138 = pneg %p87
      %p139 = scmp.lt.s32.totalorder %s31, 1
      %s140 = scalar_select %p139, %s31, 1
      %p141 = scmp.lt.s32.totalorder %s32, 0
      %s142 = scalar_select %p141, %s32, 0
      %s143 = smul.addr %s142, 12
      %s144 = smul.addr %s140, 12
      %s145 = sadd.s32 %s143, %s144
      %s146 = scalar_lea.vmem %s3, %s145
      %p147 = scmp.lt.s32.totalorder %s31, 1
      %s148 = scalar_select %p147, %s31, 1
      %p149 = scmp.lt.s32.totalorder %s32, 0
      %s150 = scalar_select %p149, %s32, 0
      %s151 = smul.addr %s150, 12
      %s152 = smul.addr %s148, 12
      %s153 = sadd.s32 %s151, %s152
      %s154 = scalar_lea.vmem %s2, %s153
      %p155 = scmp.lt.s32.totalorder %s31, 1
      %s156 = scalar_select %p155, %s31, 1
      %p157 = scmp.lt.s32.totalorder %s32, 0
      %s158 = scalar_select %p157, %s32, 0
      %s159 = smul.addr %s158, 12
      %s160 = smul.addr %s156, 12
      %s161 = sadd.s32 %s159, %s160
      %s162 = scalar_lea.vmem %s3, %s161
      %v163 = vld [vmem:[%s154] sm:$0xff]
      %v164 = vld [vmem:[%s154 + $0x8] sm:$0xf]
      %s165 = sld [smem:[#allocation3 + %s31]]
      %v166 = vstv %s165
      %v167 = vadd.f32 %v163, %v166
      %v168 = vadd.f32 %v164, %v166
      %s169 = sld [smem:[#allocation4 + %s31]]
      %v170 = vstv %s169
      %v171 = vmul.f32 %v167, %v170
      %v172 = vmul.f32 %v168, %v170
      %173 = vst [vmem:[%s162] sm:$0xff] %v171
      %v174 = vlaneseq
      %vm175 = vcmp.ge.s32.totalorder %v174, 0
      %vm176 = vcmp.lt.s32.totalorder %v174, 512
      %vm177 = vmand %vm175, %vm176
      %178 = vst.msk [vmem:[%s162 + $0x8] sm:$0xf] %vm177, %v172
      %p179 = scmp.lt.s32.totalorder %s31, 1
      %s180 = scalar_select %p179, %s31, 1
      %p181 = scmp.lt.s32.totalorder %s32, 0
      %s182 = scalar_select %p181, %s32, 0
      %s183 = smul.addr %s182, 12
      %s184 = smul.addr %s180, 12
      %s185 = sadd.s32 %s183, %s184
      %s186 = scalar_lea.vmem %s3, %s185
      // Predicated region
      $region25: #{threed_exposure.15} parent=23 // pred_check
        %p187 = pneg %p87
      $region26: #{threed_exposure.15} parent=23 // pred_check_branch
        %189 = sbr.rel (%p187) target = $region28
      $region27: #{threed_exposure.15} parent=23 // pred_region
        _
      $region28: #{threed_exposure.15} parent=23 // pred_fallthru
        _
    $region24: #{threed_exposure.15} parent=5 // pred_fallthru
      _
    %p190 = scmp.le.s32.totalorder 2, %s22
    // Predicated region
    $region29: #{threed_exposure.15} parent=5 // pred_check
      %p191 = pneg %p190
    $region30: #{threed_exposure.15} parent=5 // pred_check_branch
      %193 = sbr.rel (%p191) target = $region32
    $region31: #{threed_exposure.15} parent=5 // pred_region
      %s194 = ssub.s32 %s22, 2
      // Predicated region
      $region33: #{threed_exposure.15} parent=31 // pred_check
        %p195 = pneg %p93
      $region34: #{threed_exposure.15} parent=31 // pred_check_branch
        %197 = sbr.rel (%p195) target = $region36
      $region35: #{threed_exposure.15} parent=31 // pred_region
        %p198 = scmp.lt.s32.totalorder %s33, 1
        %s199 = scalar_select %p198, %s33, 1
        %p200 = scmp.lt.s32.totalorder %s34, 0
        %s201 = scalar_select %p200, %s34, 0
        %s202 = smul.addr %s201, 12
        %s203 = smul.addr %s199, 12
        %s204 = sadd.s32 %s202, %s203
        %s205 = scalar_lea.vmem %s3, %s204
      $region36: #{threed_exposure.15} parent=31 // pred_fallthru
        _
    $region32: #{threed_exposure.15} parent=5 // pred_fallthru
      _
  $region6: #{threed_exposure.15} parent=0 // loop_footer
    %s26 = sadd.s32 1, %s22
  $region7: #{threed_exposure.15} parent=0 // loop_footer_branch
    %21 = sbr.rel target = $region3
  $region8: #{threed_exposure.15} parent=0 // loop_exit
    _

</llo_original>
